<compile_context>
chip_gen: v7x
topology: tpu7x:2x2x1
jax: 0.10.0
libtpu: 0.0.40
codegen_flags: <defaults>
</compile_context>

<pallas_src>
import jax
import jax.numpy as jnp
from jax.experimental import pallas as pl
from jax.experimental.pallas import tpu as pltpu


# ----------------------------------------------------------------------------
# Kernel
# ----------------------------------------------------------------------------
def _encdec_kernel(alpha_ref, x_ref, w_ref, shift_ref, o_ref):
    # alpha_ref: (1,)     f32  SMEM -- PReLU shared scalar
    # x_ref:     (B, F)   f32/bf16 VMEM -- flat activations, F = m*n*n
    # w_ref:     (F, Fp)  f32/bf16 VMEM -- block-diag W with BN scale folded in,
    #                                      columns zero-padded to Fp (mult of 128)
    # shift_ref: (1, Fp)  f32  VMEM -- folded eval-mode BN shift (0 in padding)
    # o_ref:     (B, Fp)  f32  VMEM
    y = jnp.dot(x_ref[...], w_ref[...],
                preferred_element_type=jnp.float32)     # single MXU push, f32 acc
    y = y + shift_ref[...]                              # BN scale already in W cols
    a = alpha_ref[0]
    o_ref[...] = jnp.where(y > 0, y, a * y)             # PReLU; full-lane store


# ----------------------------------------------------------------------------
# One-time parameter preparation (hoisted out of the per-call path)
# ----------------------------------------------------------------------------
def prepare_params(params, m, n, compute_dtype=jnp.float32):
    """Fold BN into the per-head weights, build the lane-padded block-diagonal
    weight, and package everything the kernel needs. Call ONCE and reuse."""
    nn_ = n * n
    F = m * nn_
    Fp = max(128, ((F + 127) // 128) * 128)             # lane-dense output width
    eps = 1e-5

    scale = params["gamma"] / jnp.sqrt(params["running_var"] + eps)   # (F,)
    shift = params["beta"] - params["running_mean"] * scale           # (F,)

    w = params["w"].astype(jnp.float32)                               # (m, nn, nn)
    # Fold BN scale into output columns: (x @ W) * scale == x @ (W * scale_cols)
    w_scaled = w * scale.reshape(m, 1, nn_)

    # Block-diagonal (F, Fp) weight; extra columns stay zero (=> padded outputs 0).
    w_bd = jnp.zeros((F, Fp), jnp.float32)
    for h in range(m):
        w_bd = w_bd.at[h * nn_:(h + 1) * nn_, h * nn_:(h + 1) * nn_].set(w_scaled[h])

    shift_p = jnp.zeros((1, Fp), jnp.float32).at[0, :F].set(shift)
    alpha = params["prelu_w"].reshape(1).astype(jnp.float32)

    if compute_dtype == jnp.bfloat16:
        w_bd = w_bd.astype(jnp.bfloat16)                # bf16 MXU operands

    return {"w_bd": w_bd, "shift": shift_p, "alpha": alpha}


# ----------------------------------------------------------------------------
# Forward wrapper (jit-able; no per-call parameter math)
# ----------------------------------------------------------------------------
def encoder_to_decoder_forward(x, prepared, m, n):
    """x: (B, m, n, n) float32. Returns (B, m, n, n) float32."""
    nn_ = n * n
    F = m * nn_
    w_bd = prepared["w_bd"]
    Fp = w_bd.shape[1]

    x_flat = x.reshape(-1, F).astype(w_bd.dtype)        # free view + (optional) cast
    B = x_flat.shape[0]

    out = pl.pallas_call(
        _encdec_kernel,
        out_shape=jax.ShapeDtypeStruct((B, Fp), jnp.float32),
        in_specs=[
            pl.BlockSpec(memory_space=pltpu.MemorySpace.SMEM),   # alpha scalar
            pl.BlockSpec(memory_space=pltpu.MemorySpace.VMEM),   # x (whole array)
            pl.BlockSpec(memory_space=pltpu.MemorySpace.VMEM),   # block-diag W
            pl.BlockSpec(memory_space=pltpu.MemorySpace.VMEM),   # BN shift
        ],
        out_specs=pl.BlockSpec(memory_space=pltpu.MemorySpace.VMEM),
    )(prepared["alpha"], x_flat, w_bd, prepared["shift"])

    return out[:, :F].reshape(B, m, n, n)


# ----------------------------------------------------------------------------
# Pure-JAX references
# ----------------------------------------------------------------------------
def _reference_forward(x, params, m, n):
    """Mirrors the PyTorch forward (eval mode), full f32 precision."""
    nn_ = n * n
    x2 = x.reshape(-1, m, nn_)
    B = x2.shape[0]
    xp = jnp.transpose(x2, (1, 0, 2))                    # (m, B, nn)
    y = jnp.einsum("mbk,mkj->mbj", xp, params["w"],
                   precision=jax.lax.Precision.HIGHEST)
    y = jnp.transpose(y, (1, 0, 2)).reshape(B, m * nn_)
    eps = 1e-5
    y = (y - params["running_mean"]) / jnp.sqrt(params["running_var"] + eps)
    y = y * params["gamma"] + params["beta"]
    a = params["prelu_w"][0]
    y = jnp.where(y > 0, y, a * y)
    return y.reshape(B, m, n, n)


def _reference_from_prepared(x, prepared, m, n):
    """Reference that uses the SAME prepared (possibly bf16-rounded) operands as
    the kernel, with f32 accumulation — isolates kernel correctness from the
    bf16 input-rounding error."""
    nn_ = n * n
    F = m * nn_
    w = prepared["w_bd"].astype(jnp.float32)
    x_flat = x.reshape(-1, F).astype(prepared["w_bd"].dtype).astype(jnp.float32)
    y = jnp.dot(x_flat, w, precision=jax.lax.Precision.HIGHEST) + prepared["shift"]
    a = prepared["alpha"][0]
    y = jnp.where(y > 0, y, a * y)
    return y[:, :F].reshape(-1, m, n, n)


# ----------------------------------------------------------------------------
# Self-test
# ----------------------------------------------------------------------------
if __name__ == "__main__":
    m, n = 4, 4
    nn_ = n * n
    num_of_neurons = m * nn_
    B = 8

    key = jax.random.PRNGKey(0)
    k_x, k_w, k_bn = jax.random.split(key, 3)

    x = jax.random.normal(k_x, (B, m, n, n), dtype=jnp.float32)

    # Deterministic parameter init matching the module's __init__ shapes/defaults.
    params = {
        "w": jax.random.normal(k_w, (m, nn_, nn_), dtype=jnp.float32),  # out_channels_encoder
        "gamma": jnp.ones((num_of_neurons,), jnp.float32),              # bn.weight
        "beta": jnp.zeros((num_of_neurons,), jnp.float32),              # bn.bias
        "running_mean": jnp.zeros((num_of_neurons,), jnp.float32),
        "running_var": jnp.ones((num_of_neurons,), jnp.float32)
        + 0.1 * jnp.abs(jax.random.normal(k_bn, (num_of_neurons,), jnp.float32)),
        "prelu_w": jnp.full((1,), 0.25, jnp.float32),                   # prelu.weight
    }

    fwd = jax.jit(encoder_to_decoder_forward, static_argnums=(2, 3))

    # ---- f32 path (default): tight match against the f32 reference ----------
    prepared_f32 = prepare_params(params, m, n)          # ONCE, off the hot path
    out = jax.block_until_ready(fwd(x, prepared_f32, m, n))
    ref = jax.block_until_ready(_reference_forward(x, params, m, n))
    assert out.shape == (B, m, n, n), out.shape
    assert jnp.allclose(out, ref, atol=1e-4, rtol=1e-4), \
        float(jnp.max(jnp.abs(out - ref)))

    # ---- bf16-operand path: compare against a bf16-rounded reference --------
    prepared_bf16 = prepare_params(params, m, n, compute_dtype=jnp.bfloat16)
    out_b = jax.block_until_ready(fwd(x, prepared_bf16, m, n))
    ref_b = jax.block_until_ready(_reference_from_prepared(x, prepared_bf16, m, n))
    assert out_b.shape == (B, m, n, n), out_b.shape
    assert jnp.allclose(out_b, ref_b, atol=1e-3, rtol=1e-3), \
        float(jnp.max(jnp.abs(out_b - ref_b)))
    # Sanity: bf16 path stays close to the exact f32 reference (input rounding only).
    assert jnp.allclose(out_b, ref, atol=5e-1, rtol=1e-1), \
        float(jnp.max(jnp.abs(out_b - ref)))

    print("KERNEL_OK")
</pallas_src>

<mosaic_0001>
module attributes {stable_mosaic.version = 11 : i64} {
  func.func @_encdec_kernel(%arg0: memref<1xf32, #tpu.memory_space<smem>>, %arg1: memref<8x64xf32, #tpu.memory_space<vmem>>, %arg2: memref<64x128xf32, #tpu.memory_space<vmem>>, %arg3: memref<1x128xf32, #tpu.memory_space<vmem>>, %arg4: memref<8x128xf32, #tpu.memory_space<vmem>>) attributes {dimension_semantics = [], scalar_prefetch = 0 : i64, scratch_operands = 0 : i64, tpu.core_type = #tpu.core_type<tc>} {
    %c0 = arith.constant 0 : index
    %c0_0 = arith.constant 0 : index
    %0 = vector.load %arg1[%c0, %c0_0] : memref<8x64xf32, #tpu.memory_space<vmem>>, vector<8x64xf32>
    %c0_1 = arith.constant 0 : index
    %c0_2 = arith.constant 0 : index
    %1 = vector.load %arg2[%c0_1, %c0_2] : memref<64x128xf32, #tpu.memory_space<vmem>>, vector<64x128xf32>
    %cst = arith.constant dense<0.000000e+00> : vector<8x128xf32>
    %2 = tpu.matmul %0, %1, %cst {dimension_numbers = #tpu.dot_dimension_numbers<[1], [0], [0], [1], [0, 0, 1, 1], [], []>} : vector<8x64xf32>, vector<64x128xf32>, vector<8x128xf32> -> vector<8x128xf32>
    %c0_3 = arith.constant 0 : index
    %c0_4 = arith.constant 0 : index
    %3 = vector.load %arg3[%c0_3, %c0_4] : memref<1x128xf32, #tpu.memory_space<vmem>>, vector<1x128xf32>
    %4 = vector.broadcast %3 : vector<1x128xf32> to vector<8x128xf32>
    %5 = arith.addf %2, %4 : vector<8x128xf32>
    %c0_5 = arith.constant 0 : index
    %6 = memref.load %arg0[%c0_5] : memref<1xf32, #tpu.memory_space<smem>>
    %cst_6 = arith.constant 0.000000e+00 : f32
    %7 = vector.broadcast %cst_6 : f32 to vector<8x128xf32>
    %8 = arith.cmpf ogt, %5, %7 : vector<8x128xf32>
    %9 = vector.broadcast %6 : f32 to vector<8x128xf32>
    %10 = arith.mulf %9, %5 : vector<8x128xf32>
    %11 = arith.select %8, %5, %10 : vector<8x128xi1>, vector<8x128xf32>
    %c0_7 = arith.constant 0 : index
    %c0_8 = arith.constant 0 : index
    %12 = vector.load %arg4[%c0_7, %c0_8] : memref<8x128xf32, #tpu.memory_space<vmem>>, vector<8x128xf32>
    tpu.vector_store %arg4[%c0_7, %c0_8], %11 {strides = array<i32>} : memref<8x128xf32, #tpu.memory_space<vmem>>, vector<8x128xf32>,
    return
  }
}

</mosaic_0001>

<llo_original>
// kernel: encoder_to_decoder_forward.1
$region0: #{encoder_to_decoder_forward.1}
  #allocation0 [shape = 'u32[]', space=smem, size = 0x4, offset = 0x4, fixed_abs, tag = 'smem constant byte address 0x4 - core index']
  #allocation1 [shape = 'u32[144,128]{1,0:T(1,128)}', space=vmem, size = 0x12000, scoped, tag = 'internal scratch']
  #allocation2 [shape = 'f32[1]{0:T(128)S(6)}', space=smem, size = 0x200, scoped, tag = 'scoped memory for encoder_to_decoder_forward.1']
  %s0 = inlined_call_operand.<no memory space> [shape: f32[1], index: 0, kind: input, shape index: {}]
  %s1 = inlined_call_operand.vmem [shape: f32[8,64], index: 1, kind: input, shape index: {}]
  %s2 = inlined_call_operand.vmem [shape: f32[64,128], index: 2, kind: input, shape index: {}]
  %s3 = inlined_call_operand.vmem [shape: f32[1,128], index: 3, kind: input, shape index: {}]
  %s4 = inlined_call_operand.vmem [shape: f32[8,128], index: 4, kind: output, shape index: {}]
  %s5 = sld [smem:[#allocation0]]
  $region26: #{encoder_to_decoder_forward.1} parent=0
    _
  %s7 = ssub.s32 1, %s5
  %s8 = scalar_select 0, %s7, %s5
  %9 = sst [smem:[#allocation2]] %s0
  // Predicated region
  $region2: #{encoder_to_decoder_forward.1} parent=0 // pred_check
    _
  $region3: #{encoder_to_decoder_forward.1} parent=0 // pred_check_branch
    %11 = sbr.rel (0) target = $region5
  $region4: #{encoder_to_decoder_forward.1} parent=0 // pred_region
    _
  $region5: #{encoder_to_decoder_forward.1} parent=0 // pred_fallthru
    _
  // Predicated region
  $region6: #{encoder_to_decoder_forward.1} parent=0 // pred_check
    _
  $region7: #{encoder_to_decoder_forward.1} parent=0 // pred_check_branch
    %13 = sbr.rel (0) target = $region9
  $region8: #{encoder_to_decoder_forward.1} parent=0 // pred_region
    _
  $region9: #{encoder_to_decoder_forward.1} parent=0 // pred_fallthru
    _
  // Predicated region
  $region10: #{encoder_to_decoder_forward.1} parent=0 // pred_check
    _
  $region11: #{encoder_to_decoder_forward.1} parent=0 // pred_check_branch
    %15 = sbr.rel (0) target = $region13
  $region12: #{encoder_to_decoder_forward.1} parent=0 // pred_region
    _
  $region13: #{encoder_to_decoder_forward.1} parent=0 // pred_fallthru
    _
  // Predicated region
  $region14: #{encoder_to_decoder_forward.1} parent=0 // pred_check
    _
  $region15: #{encoder_to_decoder_forward.1} parent=0 // pred_check_branch
    %17 = sbr.rel (0) target = $region17
  $region16: #{encoder_to_decoder_forward.1} parent=0 // pred_region
    _
  $region17: #{encoder_to_decoder_forward.1} parent=0 // pred_fallthru
    _
  %v18 = vld [vmem:[%s1] sm:$0xff]
  %v19 = vld [vmem:[%s2] sm:$0xff]
  %v20 = vld [vmem:[%s2 + $0x8] sm:$0xff]
  %v21 = vld [vmem:[%s2 + $0x10] sm:$0xff]
  %v22 = vld [vmem:[%s2 + $0x18] sm:$0xff]
  %v23 = vld [vmem:[%s2 + $0x20] sm:$0xff]
  %v24 = vld [vmem:[%s2 + $0x28] sm:$0xff]
  %v25 = vld [vmem:[%s2 + $0x30] sm:$0xff]
  %v26 = vld [vmem:[%s2 + $0x38] sm:$0xff]
  %v27 = vld [vmem:[%s3] sm:$0x1]
  %v29 = vlaneseq
  %v30 = vshrl.u32 %v29, 7
  %v31 = vsub.s32 0, %v30
  %v32 = vrot.slane %v27, %v31
  %vm34 = vcmask 523264
  %v36 = vsel %vm34, %v18, 0
  %38 = vmatprep.subr.mxu0 0.0
  %39 = vmatpush1.msra.mxu0 %v19
  %40 = vmatprep.subr.mxu0 0.0
  %41 = vmatpush1.msra.mxu0 %v20
  %42 = vmatprep.subr.mxu0 0.0
  %43 = vmatpush1.msra.mxu0 %v21
  %44 = vmatprep.subr.mxu0 0.0
  %45 = vmatpush1.msra.mxu0 %v22
  %46 = vmatprep.subr.mxu0 0.0
  %47 = vmatpush1.msra.mxu0 %v23
  %48 = vmatprep.subr.mxu0 0.0
  %49 = vmatpush1.msra.mxu0 %v24
  %50 = vmatprep.subr.mxu0 0.0
  %51 = vmatpush1.msra.mxu0 %v25
  %52 = vmatprep.subr.mxu0 0.0
  %53 = vmatpush1.msra.mxu0 %v26
  %54 = vmatprep.subr.mxu0 0.0
  %55 = vmatpush1.msra.mxu0 0.0
  %56 = vmatprep.subr.mxu0 0.0
  %57 = vmatpush1.msra.mxu0 0.0
  %58 = vmatprep.subr.mxu0 0.0
  %59 = vmatpush1.msra.mxu0 0.0
  %60 = vmatprep.subr.mxu0 0.0
  %61 = vmatpush1.msra.mxu0 0.0
  %62 = vmatprep.subr.mxu0 0.0
  %63 = vmatpush1.msra.mxu0 0.0
  %64 = vmatprep.subr.mxu0 0.0
  %65 = vmatpush1.msra.mxu0 0.0
  %66 = vmatprep.subr.mxu0 0.0
  %67 = vmatpush1.msra.mxu0 0.0
  %68 = vmatprep.subr.mxu0 0.0
  %69 = vmatpush1.msra.mxu0 0.0
  %70 = vmatprep.subr.mxu0 0.0
  %71 = vmatpush1.msra.mxu0 0.0
  %72 = vmatprep.subr.mxu0 0.0
  %73 = vmatpush1.msra.mxu0 0.0
  %74 = vmatprep.subr.mxu0 0.0
  %75 = vmatpush1.msra.mxu0 0.0
  %76 = vmatprep.subr.mxu0 0.0
  %77 = vmatpush1.msra.mxu0 0.0
  %78 = vmatprep.subr.mxu0 0.0
  %79 = vmatpush1.msra.mxu0 0.0
  %80 = vmatprep.subr.mxu0 0.0
  %81 = vmatpush1.msra.mxu0 0.0
  %82 = vmatprep.subr.mxu0 0.0
  %83 = vmatpush1.msra.mxu0 0.0
  %84 = vmatprep.subr.mxu0 0.0
  %85 = vmatpush1.msra.mxu0 0.0
  %86 = vmatprep.subr.mxu0 0.0
  %87 = vmatpush1.msra.mxu0 0.0
  %88 = vmatprep.subr.mxu0 0.0
  %89 = vmatpush1.msra.mxu0 0.0
  %90 = vmatprep.subr.mxu0 0.0
  %91 = vmatpush1.msra.mxu0 0.0
  %92 = vmatprep.subr.mxu0 0.0
  %93 = vmatpush1.msra.mxu0 0.0
  %94 = vmatprep.subr.mxu0 0.0
  %95 = vmatpush1.msra.mxu0 0.0
  %96 = vmatprep.subr.mxu0 0.0
  %97 = vmatpush1.msra.mxu0 0.0
  %98 = vmatprep.subr.mxu0 0.0
  %99 = vmatpush1.msra.mxu0 0.0
  %100 = vmatprep.subr.mxu0 0.0
  %101 = vmatpush1.msra.mxu0 0.0
  %102 = vmatprep.mubr.f32.mxu0 0.0
  %103 = vmatmul.mubr.f32.gmra.mrb[0].mxu0 %v36
  %v104 = vpop.f32.mrb[0].mxu0
  %v105 = vadd.f32 %v32, %v104
  %v106 = vpop.f32.mrb[0].mxu0
  %107 = vdwg.mxu0
  %s108 = sld [smem:[#allocation2]]
  %vm109 = vcmp.gt.f32.partialorder %v105, 0.0
  %v110 = vstv %s108
  %v111 = vmul.f32 %v110, %v105
  %v112 = vsel %vm109, %v105, %v111
  %113 = vst [vmem:[%s4] sm:$0xff] %v112
  // Predicated region
  $region18: #{encoder_to_decoder_forward.1} parent=0 // pred_check
    _
  $region19: #{encoder_to_decoder_forward.1} parent=0 // pred_check_branch
    %115 = sbr.rel (0) target = $region21
  $region20: #{encoder_to_decoder_forward.1} parent=0 // pred_region
    _
  $region21: #{encoder_to_decoder_forward.1} parent=0 // pred_fallthru
    _
  // Predicated region
  $region22: #{encoder_to_decoder_forward.1} parent=0 // pred_check
    _
  $region23: #{encoder_to_decoder_forward.1} parent=0 // pred_check_branch
    %117 = sbr.rel (0) target = $region25
  $region24: #{encoder_to_decoder_forward.1} parent=0 // pred_region
    _
  $region25: #{encoder_to_decoder_forward.1} parent=0 // pred_fallthru
    _

</llo_original>
